<compile_context>
chip_gen: v5e
topology: v5e:2x2
jax: 0.10.0
libtpu: 0.0.40
codegen_flags: <defaults>
</compile_context>

<pallas_src>
import functools
import math

import jax
import jax.numpy as jnp
from jax.experimental import pallas as pl
from jax.experimental.pallas import tpu as pltpu


# ----------------------------------------------------------------------------
# helpers
# ----------------------------------------------------------------------------
def _round_up(x, m):
    return ((x + m - 1) // m) * m


def _hw_config():
    """Per-generation tiling / VMEM budget. Falls back to conservative defaults."""
    vmem_cap = 128 * 1024 * 1024
    try:
        vmem_cap = int(pltpu.get_tpu_info().vmem_capacity_bytes)
    except Exception:  # interpret mode / older runtimes
        pass
    if vmem_cap <= 80 * 1024 * 1024:
        # v7x-class: 64 MiB VMEM per TC, 2 TCs/chip -> keep >=2 grid steps, tighter limit.
        return {"max_tile": 256, "vmem_limit": 36 * 1024 * 1024, "min_steps": 2}
    # v5e / v6e: 128 MiB VMEM, single TC -> bigger streaming tiles closer to HBM roofline.
    return {"max_tile": 512, "vmem_limit": 96 * 1024 * 1024, "min_steps": 1}


def _pick_tile(n, max_tile, min_steps=1):
    """Row tile (multiple of 16 for bf16 sublane packing) and padded row count."""
    n16 = _round_up(max(n, 1), 16)
    tile = min(max_tile, n16)
    if min_steps > 1:
        want = _round_up(-(-n16 // min_steps), 16)   # split rows across TCs on v7x
        tile = max(16, min(tile, want))
    n_pad = _round_up(n16, tile)
    return tile, n_pad


def _pad_rows(a, n_to):
    if a.shape[0] == n_to:
        return a
    pad = [(0, n_to - a.shape[0])] + [(0, 0)] * (a.ndim - 1)
    return jnp.pad(a, pad)


def _compiler_params(vmem_limit):
    return pltpu.CompilerParams(
        dimension_semantics=("parallel",),
        vmem_limit_bytes=vmem_limit,
    )


# ----------------------------------------------------------------------------
# Kernel A: folded (context encoder @ post_emb) + obj classifier, one matmul
# ----------------------------------------------------------------------------
def _ctx_post_emb_kernel(x_ref, wcomb_ref, bcomb_ref, rep_ref, dist_ref):
    x = x_ref[...]                                              # (tile, Cin) bf16
    slab = (jnp.dot(x, wcomb_ref[...], preferred_element_type=jnp.float32)
            + bcomb_ref[...])                                   # (tile, slab_w) f32
    rep_w = rep_ref.shape[1]
    # 128-aligned static slices -> two unmasked lane-dense stores.
    rep_ref[...] = slab[:, :rep_w].astype(jnp.bfloat16)         # head|tail edge reps
    dist_ref[...] = slab[:, rep_w:]                             # obj classifier logits


def ctx_post_emb(roi_bf16, w_comb, b_comb, rep_w, dist_w, hw):
    n, cin = roi_bf16.shape
    tile, n_pad = _pick_tile(n, hw["max_tile"], hw["min_steps"])
    roi_bf16 = _pad_rows(roi_bf16, n_pad)
    slab_w = rep_w + dist_w

    flops = 2 * n_pad * cin * slab_w
    bytes_acc = (n_pad * cin * 2 + cin * slab_w * 2 + slab_w * 4
                 + n_pad * rep_w * 2 + n_pad * dist_w * 4)

    return pl.pallas_call(
        _ctx_post_emb_kernel,
        out_shape=(jax.ShapeDtypeStruct((n_pad, rep_w), jnp.bfloat16),
                   jax.ShapeDtypeStruct((n_pad, dist_w), jnp.float32)),
        grid=(n_pad // tile,),
        in_specs=[
            pl.BlockSpec((tile, cin), lambda i: (i, 0)),
            pl.BlockSpec(w_comb.shape, lambda i: (0, 0)),
            pl.BlockSpec(b_comb.shape, lambda i: (0, 0)),
        ],
        out_specs=[
            pl.BlockSpec((tile, rep_w), lambda i: (i, 0)),
            pl.BlockSpec((tile, dist_w), lambda i: (i, 0)),
        ],
        compiler_params=_compiler_params(hw["vmem_limit"]),
        cost_estimate=pl.CostEstimate(flops=flops, transcendentals=0,
                                      bytes_accessed=bytes_acc),
    )(roi_bf16, w_comb, b_comb)


# ----------------------------------------------------------------------------
# Kernel B: pair gather + post_cat + spt_emb gate + compress + 'sum' fusion
# ----------------------------------------------------------------------------
def _rel_head_kernel(use_spt,
                     hidx_ref, tidx_ref, rep_ref, union_ref, spt_ref, frq_ref,
                     wch_ref, wct_ref, bcat_ref,
                     ws1_ref, bs1_ref, ws2_ref, bs2_ref,
                     wctx_ref, wvis_ref, o_ref):
    tm = hidx_ref.shape[0]
    nobj, rep_w = rep_ref.shape
    h_pad = rep_w // 2
    # 128-aligned head/tail halves of the bf16 rep table: only the lanes post_cat uses.
    tbl_h = rep_ref[:, :h_pad]                                   # (nobj, H_pad) bf16
    tbl_t = rep_ref[:, h_pad:]

    # In-kernel row gather: one-hot(idx) @ table on the MXU (exact 0/1 selection).
    cols = jax.lax.broadcasted_iota(jnp.int32, (tm, nobj), 1)
    one_hot_h = (cols == hidx_ref[...]).astype(jnp.bfloat16)
    one_hot_t = (cols == tidx_ref[...]).astype(jnp.bfloat16)
    gh = jnp.dot(one_hot_h, tbl_h,
                 preferred_element_type=jnp.float32).astype(jnp.bfloat16)
    gt = jnp.dot(one_hot_t, tbl_t,
                 preferred_element_type=jnp.float32).astype(jnp.bfloat16)

    # post_cat: Linear(concat(head_rep, tail_rep)) + ReLU as two (H_pad, P) halves.
    pre = (jnp.dot(gh, wch_ref[...], preferred_element_type=jnp.float32)
           + jnp.dot(gt, wct_ref[...], preferred_element_type=jnp.float32)
           + bcat_ref[...])
    post_ctx = jnp.maximum(pre, 0.0)                             # (tm, P) f32

    if use_spt:
        # spt_emb(pair_bbox): Linear + ReLU + Linear + ReLU gating the context rep.
        s1 = (jnp.dot(spt_ref[...], ws1_ref[...],
                      preferred_element_type=jnp.float32) + bs1_ref[...])
        s1 = jnp.maximum(s1, 0.0)
        s2 = (jnp.dot(s1.astype(jnp.bfloat16), ws2_ref[...],
                      preferred_element_type=jnp.float32) + bs2_ref[...])
        s2 = jnp.maximum(s2, 0.0)
        post_ctx = post_ctx * s2                                 # f32 gate (v5e-friendly)

    ctx_d = jnp.dot(post_ctx.astype(jnp.bfloat16), wctx_ref[...],
                    preferred_element_type=jnp.float32)
    vis_d = jnp.dot(union_ref[...], wvis_ref[...],
                    preferred_element_type=jnp.float32)
    # 'sum' fusion: vis + ctx + freq (ctx/vis biases pre-folded into frq).
    o_ref[...] = (vis_d + ctx_d + frq_ref[...].astype(jnp.float32)).astype(o_ref.dtype)


def rel_head(head_idx, tail_idx, rep_tbl, union_bf, spt_bf, frq_bf,
             wch, wct, bcat, ws1, bs1, ws2, bs2, wctx, wvis, r_pad, use_spt, hw):
    nr = head_idx.shape[0]
    tile, nr_pad = _pick_tile(nr, hw["max_tile"], hw["min_steps"])
    hidx = _pad_rows(head_idx.reshape(-1, 1).astype(jnp.int32), nr_pad)
    tidx = _pad_rows(tail_idx.reshape(-1, 1).astype(jnp.int32), nr_pad)
    union_bf = _pad_rows(union_bf, nr_pad)
    spt_bf = _pad_rows(spt_bf, nr_pad)
    frq_bf = _pad_rows(frq_bf, nr_pad)

    pooling = union_bf.shape[1]
    spt_dim = spt_bf.shape[1]
    nobj, rep_w = rep_tbl.shape
    h_pad = rep_w // 2
    p_dim = wch.shape[1]
    hid = ws1.shape[1]

    flops = 2 * nr_pad * (2 * nobj * h_pad + 2 * h_pad * p_dim
                          + spt_dim * hid + hid * p_dim + 2 * p_dim * r_pad)
    bytes_acc = (nr_pad * (pooling + spt_dim + r_pad) * 2      # streamed bf16 inputs
                 + nr_pad * r_pad * 4                          # f32 output
                 + nobj * rep_w * 2                            # resident rep table
                 + (2 * h_pad * p_dim + 2 * p_dim * r_pad
                    + spt_dim * hid + hid * p_dim) * 2)        # weights

    kernel = functools.partial(_rel_head_kernel, use_spt)
    return pl.pallas_call(
        kernel,
        out_shape=jax.ShapeDtypeStruct((nr_pad, r_pad), jnp.float32),
        grid=(nr_pad // tile,),
        in_specs=[
            pl.BlockSpec((tile, 1), lambda i: (i, 0)),           # head_idx
            pl.BlockSpec((tile, 1), lambda i: (i, 0)),           # tail_idx
            pl.BlockSpec(rep_tbl.shape, lambda i: (0, 0)),       # bf16 rep table (resident)
            pl.BlockSpec((tile, pooling), lambda i: (i, 0)),     # union_features bf16
            pl.BlockSpec((tile, spt_dim), lambda i: (i, 0)),     # pair_bbox bf16
            pl.BlockSpec((tile, r_pad), lambda i: (i, 0)),       # freq rows bf16 (+ folded b)
            pl.BlockSpec(wch.shape, lambda i: (0, 0)),
            pl.BlockSpec(wct.shape, lambda i: (0, 0)),
            pl.BlockSpec(bcat.shape, lambda i: (0, 0)),
            pl.BlockSpec(ws1.shape, lambda i: (0, 0)),
            pl.BlockSpec(bs1.shape, lambda i: (0, 0)),
            pl.BlockSpec(ws2.shape, lambda i: (0, 0)),
            pl.BlockSpec(bs2.shape, lambda i: (0, 0)),
            pl.BlockSpec(wctx.shape, lambda i: (0, 0)),
            pl.BlockSpec(wvis.shape, lambda i: (0, 0)),
        ],
        out_specs=pl.BlockSpec((tile, r_pad), lambda i: (i, 0)),
        compiler_params=_compiler_params(hw["vmem_limit"]),
        cost_estimate=pl.CostEstimate(flops=flops, transcendentals=0,
                                      bytes_accessed=bytes_acc),
    )(hidx, tidx, rep_tbl, union_bf, spt_bf, frq_bf,
      wch, wct, bcat, ws1, bs1, ws2, bs2, wctx, wvis)


# ----------------------------------------------------------------------------
# CausalAnalysisPredictor in JAX (deterministic in-script parameters)
# ----------------------------------------------------------------------------
def _xavier(key, shape):
    fan_in, fan_out = shape
    bound = math.sqrt(6.0 / (fan_in + fan_out))
    return jax.random.uniform(key, shape, jnp.float32, -bound, bound)


class CausalAnalysisPredictorPallas:
    """'motifs' context, fusion_type='sum', spatial_for_vision gate, inference path."""

    def __init__(self, key, in_channels=64, hidden_dim=32, pooling_dim=64,
                 num_obj_cls=16, num_rel_cls=32, spatial_for_vision=True):
        H, C, P, R = hidden_dim, num_obj_cls, pooling_dim, num_rel_cls
        self.hidden_dim, self.num_obj_cls = H, C
        self.pooling_dim, self.num_rel_cls = P, R
        self.spatial_for_vision = spatial_for_vision
        self.hw = _hw_config()

        # lane-dense widths (multiples of 128)
        self.h_pad = _round_up(H, 128)            # head/tail halves of the rep slab
        self.c_pad = _round_up(C, 128)            # obj classifier lanes
        self.rep_w = 2 * self.h_pad               # kernel-A bf16 rep output
        self.slab_w = self.rep_w + self.c_pad     # kernel-A fused matmul width
        self.r_pad = _round_up(R, 128)            # kernel-B output slab

        ks = jax.random.split(key, 11)
        bf16 = jnp.bfloat16

        # ---- stand-in context encoder (see TODO(synk) on LSTMContext above) ----
        w_edge = _xavier(ks[0], (in_channels, H))        # roi -> edge_ctx
        b_edge = jnp.zeros((H,), jnp.float32)
        w_obj = _xavier(ks[1], (in_channels, C))         # roi -> obj_dists
        b_obj = jnp.zeros((C,), jnp.float32)

        # post_emb: Linear(H, 2H), normal init std = 10/sqrt(H).
        w_pe = (10.0 * (1.0 / H) ** 0.5) * jax.random.normal(
            ks[2], (H, 2 * H), jnp.float32)
        b_pe = jnp.zeros((2 * H,), jnp.float32)

        # Host-side fold (no nonlinearity between the edge encoder and post_emb):
        # slab = x @ [w_edge@w_pe | w_obj] + [b_edge@w_pe + b_pe | b_obj]
        w_rep = w_edge @ w_pe                            # (in_channels, 2H)
        b_rep = b_edge @ w_pe + b_pe                     # (2H,)
        w_comb = jnp.zeros((in_channels, self.slab_w), jnp.float32)
        w_comb = w_comb.at[:, 0:H].set(w_rep[:, :H])                      # head lanes
        w_comb = w_comb.at[:, self.h_pad:self.h_pad + H].set(w_rep[:, H:])  # tail lanes
        w_comb = w_comb.at[:, self.rep_w:self.rep_w + C].set(w_obj)        # obj lanes
        b_comb = jnp.zeros((1, self.slab_w), jnp.float32)
        b_comb = b_comb.at[0, 0:H].set(b_rep[:H])
        b_comb = b_comb.at[0, self.h_pad:self.h_pad + H].set(b_rep[H:])
        b_comb = b_comb.at[0, self.rep_w:self.rep_w + C].set(b_obj)
        self.w_comb = w_comb.astype(bf16)
        self.b_comb = b_comb

        # post_cat: Linear(2H, P) + ReLU, as two (H_pad, P) halves (no padded contraction
        # over obj_dists lanes).
        w_cat = _xavier(ks[3], (2 * H, P))
        self.wch = (jnp.zeros((self.h_pad, P), jnp.float32)
                    .at[:H, :].set(w_cat[:H]).astype(bf16))
        self.wct = (jnp.zeros((self.h_pad, P), jnp.float32)
                    .at[:H, :].set(w_cat[H:]).astype(bf16))
        self.bcat = jnp.zeros((1, P), jnp.float32)

        # spt_emb: Linear(32, H) + ReLU + Linear(H, P) + ReLU.
        self.ws1 = _xavier(ks[4], (32, H)).astype(bf16)
        self.bs1 = jnp.zeros((1, H), jnp.float32)
        self.ws2 = _xavier(ks[5], (H, P)).astype(bf16)
        self.bs2 = jnp.zeros((1, P), jnp.float32)

        # ctx_compress / vis_compress: Linear(P, R), zero-padded to 128 lanes.
        w_ctx = _xavier(ks[6], (P, R))
        w_vis = _xavier(ks[7], (P, R))
        b_ctx = 0.01 * jax.random.normal(ks[8], (R,), jnp.float32)
        b_vis = 0.01 * jax.random.normal(ks[9], (R,), jnp.float32)
        self.wctx = (jnp.zeros((P, self.r_pad), jnp.float32)
                     .at[:, :R].set(w_ctx).astype(bf16))
        self.wvis = (jnp.zeros((P, self.r_pad), jnp.float32)
                     .at[:, :R].set(w_vis).astype(bf16))

        # FrequencyBias table, lane-padded, ctx/vis biases folded in -> the kernel does a
        # single add per output element.  Stored bf16 (halves the gathered-row traffic).
        # NOTE: valid for fusion_type='sum' only; unfold for 'gate' / TDE passes.
        freq = 0.1 * jax.random.normal(ks[10], (C * C, R), jnp.float32)
        self.freq_tbl = (jnp.zeros((C * C, self.r_pad), jnp.float32)
                         .at[:, :R].set(freq + b_ctx + b_vis)).astype(bf16)

    def __call__(self, num_objs, rel_pair_idxs, roi_features, union_features,
                 pair_bbox):
        C, R = self.num_obj_cls, self.num_rel_cls
        n_obj = roi_features.shape[0]
        bf16 = jnp.bfloat16

        # ---- Kernel A: folded context encoder + post_emb + obj classifier ----
        rep_tbl, dists_pad = ctx_post_emb(
            roi_features.astype(bf16), self.w_comb, self.b_comb,
            self.rep_w, self.c_pad, self.hw)           # bf16 (n_pad, 2H_pad), f32 (n_pad, C_pad)
        obj_dists = dists_pad[:n_obj, :C]               # (n_obj, C) f32 logits
        # motifs label decoder excludes background (class 0) at inference.
        obj_preds = jnp.argmax(obj_dists[:, 1:], axis=-1) + 1

        # ---- pair index glue (cheap scalar/index work; stays in plain JAX) ----
        offsets, acc = [], 0
        for n in num_objs:
            offsets.append(acc)
            acc += int(n)
        head_idx = jnp.concatenate(
            [p[:, 0] + o for p, o in zip(rel_pair_idxs, offsets)], axis=0)
        tail_idx = jnp.concatenate(
            [p[:, 1] + o for p, o in zip(rel_pair_idxs, offsets)], axis=0)
        n_rel = int(head_idx.shape[0])

        # FrequencyBias row lookup (XLA gather: at real scale the table is 151^2 x R,
        # too large for an in-kernel one-hot gather).  ctx/vis biases already folded.
        freq_idx = obj_preds[head_idx] * C + obj_preds[tail_idx]
        frq = self.freq_tbl[freq_idx]                   # (n_rel, r_pad) bf16

        # ---- Kernel B: gather + post_cat + spt_emb gate + compress + 'sum' fusion ----
        rel_slab = rel_head(head_idx, tail_idx, rep_tbl,
                            union_features.astype(bf16), pair_bbox.astype(bf16), frq,
                            self.wch, self.wct, self.bcat,
                            self.ws1, self.bs1, self.ws2, self.bs2,
                            self.wctx, self.wvis,
                            self.r_pad, self.spatial_for_vision, self.hw)
        rel_dists = rel_slab[:n_rel, :R]

        # ---- split per image ----
        num_rels = [int(p.shape[0]) for p in rel_pair_idxs]
        obj_cuts, a = [], 0
        for n in num_objs[:-1]:
            a += int(n)
            obj_cuts.append(a)
        rel_cuts, b = [], 0
        for n in num_rels[:-1]:
            b += int(n)
            rel_cuts.append(b)
        obj_dist_list = jnp.split(obj_dists, obj_cuts, axis=0)
        rel_dist_list = jnp.split(rel_dists, rel_cuts, axis=0)
        add_losses = {}
        return obj_dist_list, rel_dist_list, add_losses


# ----------------------------------------------------------------------------
# Demo
# ----------------------------------------------------------------------------
if __name__ == "__main__":
    key = jax.random.PRNGKey(0)
    k_model, k_roi, k_union, k_box, k_p0, k_p1 = jax.random.split(key, 6)

    in_channels = 64
    hidden_dim = 32
    pooling_dim = 64       # == MODEL.ROI_BOX_HEAD.MLP_HEAD_DIM (asserted by the module)
    num_obj_cls = 16
    num_rel_cls = 32

    num_objs = [5, 3]                     # objects per image (2 images)
    num_rels = [4, 6]                     # relation pairs per image
    n_obj_total = sum(num_objs)
    n_rel_total = sum(num_rels)

    roi_features = jax.random.normal(
        k_roi, (n_obj_total, in_channels), jnp.float32)
    union_features = jax.random.normal(
        k_union, (n_rel_total, pooling_dim), jnp.float32)
    pair_bbox = jax.random.normal(
        k_box, (n_rel_total, 32), jnp.float32)    # stand-in get_box_pair_info features
    rel_pair_idxs = [
        jax.random.randint(k_p0, (num_rels[0], 2), 0, num_objs[0], jnp.int32),
        jax.random.randint(k_p1, (num_rels[1], 2), 0, num_objs[1], jnp.int32),
    ]

    model = CausalAnalysisPredictorPallas(
        k_model, in_channels=in_channels, hidden_dim=hidden_dim,
        pooling_dim=pooling_dim, num_obj_cls=num_obj_cls, num_rel_cls=num_rel_cls,
        spatial_for_vision=True)

    obj_dists, rel_dists, add_losses = model(
        num_objs, rel_pair_idxs, roi_features, union_features, pair_bbox)

    for t in obj_dists + rel_dists:
        jax.block_until_ready(t)

    assert [tuple(t.shape) for t in obj_dists] == [(5, num_obj_cls), (3, num_obj_cls)]
    assert [tuple(t.shape) for t in rel_dists] == [(4, num_rel_cls), (6, num_rel_cls)]
    assert all(bool(jnp.all(jnp.isfinite(t))) for t in obj_dists + rel_dists)
    print("KERNEL_OK")
</pallas_src>

<mosaic_0001>
module attributes {stable_mosaic.version = 11 : i64} {
  func.func @_ctx_post_emb_kernel(%arg0: i32, %arg1: memref<16x64xbf16, #tpu.memory_space<vmem>>, %arg2: memref<64x384xbf16, #tpu.memory_space<vmem>>, %arg3: memref<1x384xf32, #tpu.memory_space<vmem>>, %arg4: memref<16x256xbf16, #tpu.memory_space<vmem>>, %arg5: memref<16x128xf32, #tpu.memory_space<vmem>>) attributes {dimension_semantics = [#tpu.dimension_semantics<parallel>], iteration_bounds = array<i64: 1>, scalar_prefetch = 0 : i64, scratch_operands = 0 : i64, tpu.core_type = #tpu.core_type<tc>, window_params = [{transform_indices = @transform_0, window_bounds = array<i64: 16, 64>}, {pipeline_mode = #tpu.pipeline_mode<synchronous>, transform_indices = @transform_1, window_bounds = array<i64: 64, 384>}, {pipeline_mode = #tpu.pipeline_mode<synchronous>, transform_indices = @transform_2, window_bounds = array<i64: 1, 384>}, {transform_indices = @transform_3, window_bounds = array<i64: 16, 256>}, {transform_indices = @transform_4, window_bounds = array<i64: 16, 128>}]} {
    %c0 = arith.constant 0 : index
    %c0_0 = arith.constant 0 : index
    %0 = vector.load %arg1[%c0, %c0_0] : memref<16x64xbf16, #tpu.memory_space<vmem>>, vector<16x64xbf16>
    %c0_1 = arith.constant 0 : index
    %c0_2 = arith.constant 0 : index
    %1 = vector.load %arg2[%c0_1, %c0_2] : memref<64x384xbf16, #tpu.memory_space<vmem>>, vector<64x384xbf16>
    %cst = arith.constant dense<0.000000e+00> : vector<16x384xf32>
    %2 = tpu.matmul %0, %1, %cst {dimension_numbers = #tpu.dot_dimension_numbers<[1], [0], [0], [1], [0, 0, 1, 1], [], []>} : vector<16x64xbf16>, vector<64x384xbf16>, vector<16x384xf32> -> vector<16x384xf32>
    %c0_3 = arith.constant 0 : index
    %c0_4 = arith.constant 0 : index
    %3 = vector.load %arg3[%c0_3, %c0_4] : memref<1x384xf32, #tpu.memory_space<vmem>>, vector<1x384xf32>
    %4 = vector.broadcast %3 : vector<1x384xf32> to vector<16x384xf32>
    %5 = arith.addf %2, %4 : vector<16x384xf32>
    %6 = vector.extract_strided_slice %5 {offsets = [0, 0], sizes = [16, 256], strides = [1, 1]} : vector<16x384xf32> to vector<16x256xf32>
    %7 = arith.truncf %6 : vector<16x256xf32> to vector<16x256xbf16>
    %c0_5 = arith.constant 0 : index
    %c0_6 = arith.constant 0 : index
    %8 = vector.load %arg4[%c0_5, %c0_6] : memref<16x256xbf16, #tpu.memory_space<vmem>>, vector<16x256xbf16>
    tpu.vector_store %arg4[%c0_5, %c0_6], %7 {strides = array<i32>} : memref<16x256xbf16, #tpu.memory_space<vmem>>, vector<16x256xbf16>,
    %9 = vector.extract_strided_slice %5 {offsets = [0, 256], sizes = [16, 128], strides = [1, 1]} : vector<16x384xf32> to vector<16x128xf32>
    %c0_7 = arith.constant 0 : index
    %c0_8 = arith.constant 0 : index
    %10 = vector.load %arg5[%c0_7, %c0_8] : memref<16x128xf32, #tpu.memory_space<vmem>>, vector<16x128xf32>
    tpu.vector_store %arg5[%c0_7, %c0_8], %9 {strides = array<i32>} : memref<16x128xf32, #tpu.memory_space<vmem>>, vector<16x128xf32>,
    return
  }
  func.func @transform_0(%arg0: i32) -> (i32, i32) {
    %c0_i32 = arith.constant 0 : i32
    %c0_i32_0 = arith.constant 0 : i32
    return %arg0, %c0_i32 : i32, i32
  }
  func.func @transform_1(%arg0: i32) -> (i32, i32) {
    %c0_i32 = arith.constant 0 : i32
    %c0_i32_0 = arith.constant 0 : i32
    %c0_i32_1 = arith.constant 0 : i32
    return %c0_i32, %c0_i32_0 : i32, i32
  }
  func.func @transform_2(%arg0: i32) -> (i32, i32) {
    %c0_i32 = arith.constant 0 : i32
    %c0_i32_0 = arith.constant 0 : i32
    %c0_i32_1 = arith.constant 0 : i32
    return %c0_i32, %c0_i32_0 : i32, i32
  }
  func.func @transform_3(%arg0: i32) -> (i32, i32) {
    %c0_i32 = arith.constant 0 : i32
    %c0_i32_0 = arith.constant 0 : i32
    return %arg0, %c0_i32 : i32, i32
  }
  func.func @transform_4(%arg0: i32) -> (i32, i32) {
    %c0_i32 = arith.constant 0 : i32
    %c0_i32_0 = arith.constant 0 : i32
    return %arg0, %c0_i32 : i32, i32
  }
}

</mosaic_0001>

<llo_original>
// kernel: tpu_custom_call.1
$region0: #{tpu_custom_call.1}
  #allocation0 [shape = 'u32[]', space=smem, size = 0x4, offset = 0x4, fixed_abs, tag = 'smem constant byte address 0x4 - core index']
  #allocation1 [shape = 'u32[72,128]{1,0:T(1,128)}', space=vmem, size = 0x9000, scoped, tag = 'internal scratch']
  %s0 = inlined_call_operand.hbm [shape: bf16[16,64], index: 0, kind: input, shape index: {}]
  %s1 = inlined_call_operand.hbm [shape: bf16[64,384], index: 1, kind: input, shape index: {}]
  %s2 = inlined_call_operand.hbm [shape: f32[1,384], index: 2, kind: input, shape index: {}]
  %s3 = inlined_call_operand.hbm [shape: bf16[16,256], index: 3, kind: output, shape index: {0}]
  %s4 = inlined_call_operand.hbm [shape: f32[16,128], index: 4, kind: output, shape index: {1}]
  %5 = xla_tuple %s3, %s4
  %s6 = sld [smem:[#allocation0]]
  $region42: #{tpu_custom_call.1} parent=0
    _
  %s8 = ssub.s32 1, %s6
  %s9 = scalar_select 0, %s8, %s6
  $region1: #{tpu_custom_call.1} parent=0
    #allocation2 [shape = 'u8[4096]{0}', space=vmem, size = 0x1000, scoped, tag = 'input window, operand 0, single buffered']
    #allocation3 [shape = 's32[1]{0}', space=sflag, size = 0x4, scoped, tag = 'scoped memory for tpu_custom_call.1']
    #allocation4 [shape = 's32[1]{0}', space=sflag, size = 0x4, scoped, tag = 'scoped memory for tpu_custom_call.1']
    #allocation5 [shape = 'u8[49152]{0}', space=vmem, size = 0xc000, scoped, tag = 'input window, operand 1, single buffered']
    #allocation6 [shape = 's32[1]{0}', space=sflag, size = 0x4, scoped, tag = 'scoped memory for tpu_custom_call.1']
    #allocation7 [shape = 'u8[1536]{0}', space=vmem, size = 0x800, scoped, tag = 'input window, operand 2, single buffered']
    #allocation8 [shape = 'u8[8192]{0}', space=vmem, size = 0x2000, scoped, tag = 'output window, operand 0, single buffered']
    #allocation9 [shape = 'u8[8192]{0}', space=vmem, size = 0x2000, scoped, tag = 'output window, operand 1, single buffered']
    #allocation10 [shape = 's32[1]{0}', space=sflag, size = 0x4, scoped, tag = 'scoped memory for tpu_custom_call.1']
    %10 = vsyncpa [#allocation3], 0
    %11 = vsyncpa [#allocation6], 0
    %12 = vsyncpa [#allocation4], 0
    %13 = vsyncpa [#allocation10], 0
    // Predicated region
    $region2: #{tpu_custom_call.1} parent=1 // pred_check
      _
    $region3: #{tpu_custom_call.1} parent=1 // pred_check_branch
      %15 = sbr.rel (0) target = $region5
    $region4: #{tpu_custom_call.1} parent=1 // pred_region
      %17 = vsyncadd [#allocation3], 0
      %s18 = sshll.u32 %s0, 4
      %s19 = int_to_ptr.hbm [resolvable:$true] %s18
      %s20 = sshll.u32 [#allocation2], 4
      %s21 = int_to_ptr.vmem [resolvable:$true] %s20
      %26 = dma.hbm_to_vmem [thread:$0]  %s19, 128, %s21, [#allocation3], 64, 64, 4
    $region5: #{tpu_custom_call.1} parent=1 // pred_fallthru
      _
    // Predicated region
    $region6: #{tpu_custom_call.1} parent=1 // pred_check
      _
    $region7: #{tpu_custom_call.1} parent=1 // pred_check_branch
      %28 = sbr.rel (0) target = $region9
    $region8: #{tpu_custom_call.1} parent=1 // pred_region
      %30 = vsyncadd [#allocation6], 0
      %s31 = sshll.u32 %s1, 4
      %s32 = int_to_ptr.hbm [resolvable:$true] %s31
      %s33 = sshll.u32 [#allocation5], 4
      %s34 = int_to_ptr.vmem [resolvable:$true] %s33
      %39 = dma.hbm_to_vmem [thread:$0]  %s32, 1536, %s34, [#allocation6], 192, 192, 12
    $region9: #{tpu_custom_call.1} parent=1 // pred_fallthru
      _
    // Predicated region
    $region10: #{tpu_custom_call.1} parent=1 // pred_check
      _
    $region11: #{tpu_custom_call.1} parent=1 // pred_check_branch
      %41 = sbr.rel (0) target = $region13
    $region12: #{tpu_custom_call.1} parent=1 // pred_region
      %43 = vsyncadd [#allocation6], 0
      %s45 = sshll.u32 %s2, 4
      %s46 = int_to_ptr.hbm [resolvable:$true] %s45
      %s47 = sshll.u32 [#allocation7], 4
      %s48 = int_to_ptr.vmem [resolvable:$true] %s47
      %50 = dma.hbm_to_vmem [thread:$0]  %s46, 48, %s48, [#allocation6]
    $region13: #{tpu_custom_call.1} parent=1 // pred_fallthru
      _
    // Predicated region
    $region14: #{tpu_custom_call.1} parent=1 // pred_check
      _
    $region15: #{tpu_custom_call.1} parent=1 // pred_check_branch
      %52 = sbr.rel (0) target = $region17
    $region16: #{tpu_custom_call.1} parent=1 // pred_region
      %54 = dma.done [#allocation3], 128
    $region17: #{tpu_custom_call.1} parent=1 // pred_fallthru
      _
    // Predicated region
    $region18: #{tpu_custom_call.1} parent=1 // pred_check
      _
    $region19: #{tpu_custom_call.1} parent=1 // pred_check_branch
      %56 = sbr.rel (0) target = $region21
    $region20: #{tpu_custom_call.1} parent=1 // pred_region
      %58 = dma.done [#allocation6], 1536
    $region21: #{tpu_custom_call.1} parent=1 // pred_fallthru
      _
    // Predicated region
    $region22: #{tpu_custom_call.1} parent=1 // pred_check
      _
    $region23: #{tpu_custom_call.1} parent=1 // pred_check_branch
      %60 = sbr.rel (0) target = $region25
    $region24: #{tpu_custom_call.1} parent=1 // pred_region
      %62 = dma.done [#allocation6], 48
    $region25: #{tpu_custom_call.1} parent=1 // pred_fallthru
      _
    %v64 = vld [vmem:[#allocation2] sm:$0xf]
    %v65 = vld [vmem:[#allocation2 + $0x4] sm:$0xf]
    %v66 = vld [vmem:[#allocation5] sm:$0xff]
    %v67 = vld [vmem:[#allocation5 + $0x8] sm:$0xf]
    %v68 = vld [vmem:[#allocation5 + $0xc] sm:$0xff]
    %v69 = vld [vmem:[#allocation5 + $0x14] sm:$0xf]
    %v70 = vld [vmem:[#allocation5 + $0x18] sm:$0xff]
    %v71 = vld [vmem:[#allocation5 + $0x20] sm:$0xf]
    %v72 = vld [vmem:[#allocation5 + $0x24] sm:$0xff]
    %v73 = vld [vmem:[#allocation5 + $0x2c] sm:$0xf]
    %v74 = vld [vmem:[#allocation5 + $0x30] sm:$0xff]
    %v75 = vld [vmem:[#allocation5 + $0x38] sm:$0xf]
    %v76 = vld [vmem:[#allocation5 + $0x3c] sm:$0xff]
    %v77 = vld [vmem:[#allocation5 + $0x44] sm:$0xf]
    %v78 = vld [vmem:[#allocation5 + $0x48] sm:$0xff]
    %v79 = vld [vmem:[#allocation5 + $0x50] sm:$0xf]
    %v80 = vld [vmem:[#allocation5 + $0x54] sm:$0xff]
    %v81 = vld [vmem:[#allocation5 + $0x5c] sm:$0xf]
    %v82 = vld [vmem:[#allocation7] sm:$0x7]
    %v84 = vperm.slane %v82, 0
    %v85 = vperm.slane %v82, 1
    %v86 = vperm.slane %v82, 2
    %v92 = vunpack.c.l.b16 %v64
    %v93 = vunpack.c.l.b16 %v65
    %v94 = vpack.c.b16 %v93, %v92
    %v111 = vunpack.c.l.b16 %v66
    %v112 = vunpack.c.h.b16 %v66
    %v113 = vunpack.c.l.b16 %v67
    %v114 = vunpack.c.l.b16 %v68
    %v115 = vunpack.c.h.b16 %v68
    %v116 = vunpack.c.l.b16 %v69
    %v117 = vunpack.c.l.b16 %v70
    %v118 = vunpack.c.h.b16 %v70
    %v119 = vunpack.c.l.b16 %v71
    %v120 = vunpack.c.l.b16 %v72
    %v121 = vunpack.c.h.b16 %v72
    %v122 = vunpack.c.l.b16 %v73
    %v123 = vunpack.c.l.b16 %v74
    %v124 = vunpack.c.h.b16 %v74
    %v125 = vunpack.c.l.b16 %v75
    %v126 = vunpack.c.l.b16 %v76
    %v127 = vunpack.c.h.b16 %v76
    %v128 = vunpack.c.l.b16 %v77
    %v129 = vunpack.c.l.b16 %v78
    %v130 = vunpack.c.h.b16 %v78
    %v131 = vunpack.c.l.b16 %v79
    %v132 = vunpack.c.l.b16 %v80
    %v133 = vunpack.c.h.b16 %v80
    %v134 = vunpack.c.l.b16 %v81
    %v135 = vpack.c.b16 %v114, %v111
    %v136 = vpack.c.b16 %v115, %v112
    %v137 = vpack.c.b16 %v116, %v113
    %v138 = vpack.c.b16 %v120, %v117
    %v139 = vpack.c.b16 %v121, %v118
    %v140 = vpack.c.b16 %v122, %v119
    %v141 = vpack.c.b16 %v126, %v123
    %v142 = vpack.c.b16 %v127, %v124
    %v143 = vpack.c.b16 %v128, %v125
    %v144 = vpack.c.b16 %v132, %v129
    %v145 = vpack.c.b16 %v133, %v130
    %v146 = vpack.c.b16 %v134, %v131
    %vm159 = vcmask 523264
    %v161 = vsel %vm159, %v94, 0
    %163 = vmatpush.bf16.msra.mxu0 0
    %164 = vmatpush.bf16.msra.mxu0 0
    %165 = vmatpush.bf16.msra.mxu0 0
    %166 = vmatpush.bf16.msra.mxu0 0
    %167 = vmatpush.bf16.msra.mxu0 %v144
    %168 = vmatpush.bf16.msra.mxu0 %v141
    %169 = vmatpush.bf16.msra.mxu0 %v138
    %170 = vmatpush.bf16.msra.mxu0 %v135
    %171 = vmatmul.bf16.gmra.mxu0 %v161
    %v172 = vpop.f32.mrf.mxu0
    %v173 = vadd.f32 %v84, %v172
    %v174 = vpop.f32.mrf.mxu0
    %v175 = vadd.f32 %v84, %v174
    %176 = vdwg.mxu0
    %177 = vmatpush.bf16.msra.mxu0 0
    %178 = vmatpush.bf16.msra.mxu0 0
    %179 = vmatpush.bf16.msra.mxu0 0
    %180 = vmatpush.bf16.msra.mxu0 0
    %181 = vmatpush.bf16.msra.mxu0 %v145
    %182 = vmatpush.bf16.msra.mxu0 %v142
    %183 = vmatpush.bf16.msra.mxu0 %v139
    %184 = vmatpush.bf16.msra.mxu0 %v136
    %185 = vmatmul.bf16.gmra.mxu0 %v161
    %v186 = vpop.f32.mrf.mxu0
    %v187 = vadd.f32 %v85, %v186
    %v188 = vpop.f32.mrf.mxu0
    %v189 = vadd.f32 %v85, %v188
    %190 = vdwg.mxu0
    %191 = vmatpush.bf16.msra.mxu0 0
    %192 = vmatpush.bf16.msra.mxu0 0
    %193 = vmatpush.bf16.msra.mxu0 0
    %194 = vmatpush.bf16.msra.mxu0 0
    %195 = vmatpush.bf16.msra.mxu0 %v146
    %196 = vmatpush.bf16.msra.mxu0 %v143
    %197 = vmatpush.bf16.msra.mxu0 %v140
    %198 = vmatpush.bf16.msra.mxu0 %v137
    %199 = vmatmul.bf16.gmra.mxu0 %v161
    %v200 = vpop.f32.mrf.mxu0
    %v201 = vadd.f32 %v86, %v200
    %v202 = vpop.f32.mrf.mxu0
    %v203 = vadd.f32 %v86, %v202
    %204 = vdwg.mxu0
    %v205 = vpack.c.bf16 %v187, %v173
    %v206 = vpack.c.bf16 %v189, %v175
    %207 = vst [vmem:[#allocation8] sm:$0xff] %v205
    %208 = vst [vmem:[#allocation8 + $0x8] sm:$0xff] %v206
    %209 = vst [vmem:[#allocation9] sm:$0xff] %v201
    %210 = vst [vmem:[#allocation9 + $0x8] sm:$0xff] %v203
    // Predicated region
    $region26: #{tpu_custom_call.1} parent=1 // pred_check
      _
    $region27: #{tpu_custom_call.1} parent=1 // pred_check_branch
      %212 = sbr.rel (0) target = $region29
    $region28: #{tpu_custom_call.1} parent=1 // pred_region
      %214 = vsyncadd [#allocation4], 0
      %s215 = sshll.u32 [#allocation8], 4
      %s216 = int_to_ptr.vmem [resolvable:$true] %s215
      %s217 = sshll.u32 %s3, 4
      %s218 = int_to_ptr.hbm [resolvable:$true] %s217
      %223 = dma.vmem_to_hbm [thread:$0]  %s216, 256, %s218, [#allocation4], 128, 128, 8
    $region29: #{tpu_custom_call.1} parent=1 // pred_fallthru
      _
    // Predicated region
    $region30: #{tpu_custom_call.1} parent=1 // pred_check
      _
    $region31: #{tpu_custom_call.1} parent=1 // pred_check_branch
      %225 = sbr.rel (0) target = $region33
    $region32: #{tpu_custom_call.1} parent=1 // pred_region
      %227 = vsyncadd [#allocation10], 0
      %s228 = sshll.u32 [#allocation9], 4
      %s229 = int_to_ptr.vmem [resolvable:$true] %s228
      %s230 = sshll.u32 %s4, 4
      %s231 = int_to_ptr.hbm [resolvable:$true] %s230
      %236 = dma.vmem_to_hbm [thread:$0]  %s229, 256, %s231, [#allocation10], 128, 128, 8
    $region33: #{tpu_custom_call.1} parent=1 // pred_fallthru
      _
    // Predicated region
    $region34: #{tpu_custom_call.1} parent=1 // pred_check
      _
    $region35: #{tpu_custom_call.1} parent=1 // pred_check_branch
      %238 = sbr.rel (0) target = $region37
    $region36: #{tpu_custom_call.1} parent=1 // pred_region
      %240 = dma.done [#allocation4], 256
    $region37: #{tpu_custom_call.1} parent=1 // pred_fallthru
      _
    // Predicated region
    $region38: #{tpu_custom_call.1} parent=1 // pred_check
      _
    $region39: #{tpu_custom_call.1} parent=1 // pred_check_branch
      %242 = sbr.rel (0) target = $region41
    $region40: #{tpu_custom_call.1} parent=1 // pred_region
      %244 = dma.done [#allocation10], 256
    $region41: #{tpu_custom_call.1} parent=1 // pred_fallthru
      _
    %245 = vsyncpa [#allocation3], 1
    %246 = vsyncpa [#allocation6], 1
    %247 = vsyncpa [#allocation4], 1
    %248 = vsyncpa [#allocation10], 1

</llo_original>
